<compile_context>
chip_gen: v7x
topology: tpu7x:2x2x1
jax: 0.10.0
libtpu: 0.0.40
codegen_flags: <defaults>
</compile_context>

<pallas_src>
import functools
import math

import jax
import jax.numpy as jnp
from jax import lax
from jax.experimental import pallas as pl
from jax.experimental.pallas import tpu as pltpu


def _round_up(x, m):
    return ((x + m - 1) // m) * m


def _pick_q_tile(b):
    bq8 = _round_up(max(b, 1), 8)
    for c in (256, 128):
        if bq8 % c == 0:
            return c
    # TODO(synk): guarantee num_q >= 2 (and even) for v7x 2-TC utilization on small batches.
    return min(bq8, 256)


def _pick_k_tile(two_b):
    kb = _round_up(max(two_b, 1), 128)
    for c in (512, 256):
        if kb % c == 0:
            return c
    return min(kb, 512)


def _ntxent_kernel(q_ref, kt_ref, out_ref, pos_s, l_s,
                   *, tq, tk, b, inv_temp, pad_k):
    qi = pl.program_id(0)
    ki = pl.program_id(1)
    last_k = pl.num_programs(1) - 1

    @pl.when(ki == 0)
    def _init():
        # Positive logit per row: <q1, q2>.  Inputs already carry sqrt(1/T) each,
        # so this is cos(z1_i, z2_i) / T (same value for both views' rows).
        q = q_ref[...].astype(jnp.float32)            # (2*tq, F), once per query tile
        pos_s[...] = jnp.sum(q[0:tq, :] * q[tq:2 * tq, :], axis=-1, keepdims=True)
        l_s[...] = jnp.zeros_like(l_s)

    # Single MXU matmul per step: (2*tq, F) x (F, tk), bf16 in / f32 accumulate.
    s = jnp.dot(q_ref[...], kt_ref[...], preferred_element_type=jnp.float32)

    # Cosine logits are bounded by inv_temp -> fixed softmax shift, no running max.
    e = jnp.exp(s - inv_temp)
    l_s[...] += jnp.sum(e, axis=-1, keepdims=True)

    q0 = qi * tq      # view-1 query rows [q0, q0+tq); view-2 rows [b+q0, b+q0+tq)
    k0 = ki * tk      # key columns [k0, k0+tk) of the concatenated [z1; z2] keys

    # Remove the self-similarity (full-matrix diagonal) contribution.  Only tiles
    # that actually intersect the diagonal pay for the iotas / selects.
    ov1 = (q0 < k0 + tk) & (k0 < q0 + tq)
    ov2 = (b + q0 < k0 + tk) & (k0 < b + q0 + tq)

    @pl.when(ov1 | ov2)
    def _mask_diag():
        r = lax.broadcasted_iota(jnp.int32, (2 * tq, tk), 0)
        c = lax.broadcasted_iota(jnp.int32, (2 * tq, tk), 1)
        row_g = q0 + r + jnp.where(r >= tq, b - tq, 0)   # global full-matrix row
        col_g = k0 + c                                   # global full-matrix column
        diag_e = jnp.where(row_g == col_g, e, 0.0)
        l_s[...] -= jnp.sum(diag_e, axis=-1, keepdims=True)

    if pad_k > 0:
        # Remove zero-padded key columns (they only exist in the last key tile).
        @pl.when(ki == last_k)
        def _mask_pad():
            c = lax.broadcasted_iota(jnp.int32, (2 * tq, tk), 1)
            pad_e = jnp.where(k0 + c >= 2 * b, e, 0.0)
            l_s[...] -= jnp.sum(pad_e, axis=-1, keepdims=True)

    @pl.when(ki == last_k)
    def _finalize():
        # log-prob of the (single) positive per row, summed over both views:
        #   (pos - m - log l_view1) + (pos - m - log l_view2),  m = inv_temp.
        l = l_s[...]
        out_ref[...] = (2.0 * pos_s[...] - 2.0 * inv_temp
                        - jnp.log(l[0:tq, :]) - jnp.log(l[tq:2 * tq, :]))


def ntxent_loss(z1, z2, temperature=0.5, *, matmul_dtype=jnp.bfloat16,
                q_tile=None, k_tile=None):
    """NT-Xent loss matching avalanche NTXentLoss.forward({'z': [z1, z2]})."""
    b, f = z1.shape
    assert z2.shape == (b, f)
    two_b = 2 * b
    inv_temp = 1.0 / float(temperature)

    tq = _round_up(int(q_tile), 8) if q_tile is not None else _pick_q_tile(b)
    tk = _round_up(int(k_tile), 128) if k_tile is not None else _pick_k_tile(two_b)
    bq = _round_up(b, tq)
    kp = _round_up(two_b, tk)
    num_q = bq // tq
    num_k = kp // tk
    pad_q = bq - b
    pad_k = kp - two_b

    # --- One-time HBM preprocessing (plain JAX) ------------------------------
    # Normalize in f32, fold sqrt(1/T) into BOTH operands (so q.k = cos/T), cast
    # to bf16.  Keys never get re-normalized / re-cast inside the kernel.
    scale = math.sqrt(inv_temp)

    def _prep(z):
        z = z.astype(jnp.float32)
        inv_n = lax.rsqrt(jnp.maximum(jnp.sum(z * z, axis=-1, keepdims=True), 1e-24))
        return (z * inv_n * scale).astype(matmul_dtype)

    z1p = _prep(z1)
    z2p = _prep(z2)

    # Queries: interleave per-tile slabs [view1 rows; view2 rows] so each query
    # block is one contiguous (2*tq, F) fetch (stacked matmul LHS, no VMEM copy).
    z1q = jnp.pad(z1p, ((0, pad_q), (0, 0)))
    z2q = jnp.pad(z2p, ((0, pad_q), (0, 0)))
    zq = jnp.concatenate(
        [z1q.reshape(num_q, tq, f), z2q.reshape(num_q, tq, f)], axis=1
    ).reshape(2 * bq, f)

    # Keys: [z1n; z2n] concatenated, zero-padded to a tile multiple, TRANSPOSED to
    # (F, 2B_pad) so the kernel matmul is the canonical (M,K)x(K,N) form.
    zkt = jnp.pad(jnp.concatenate([z1p, z2p], axis=0), ((0, pad_k), (0, 0))).T

    kernel = functools.partial(
        _ntxent_kernel, tq=tq, tk=tk, b=b, inv_temp=inv_temp, pad_k=pad_k)

    itemsize = jnp.dtype(matmul_dtype).itemsize
    est_vmem = (
        2 * (2 * tq * f + f * tk) * itemsize   # double-buffered query / key blocks
        + (2 * tq + tq + 2 * tq) * 4           # l / pos scratch + out block
        + 4 * (2 * tq * tk * 4)                # s / e f32 temporaries (headroom)
    )
    vmem_limit = int(min(64 * 1024 * 1024, max(16 * 1024 * 1024, 2 * est_vmem)))

    per_row = pl.pallas_call(
        kernel,
        out_shape=jax.ShapeDtypeStruct((bq, 1), jnp.float32),
        grid_spec=pltpu.PrefetchScalarGridSpec(
            num_scalar_prefetch=0,
            grid=(num_q, num_k),
            in_specs=[
                pl.BlockSpec((2 * tq, f), lambda qi, ki: (qi, 0)),  # stacked query slab
                pl.BlockSpec((f, tk), lambda qi, ki: (0, ki)),      # transposed key tile
            ],
            out_specs=pl.BlockSpec((tq, 1), lambda qi, ki: (qi, 0)),
            scratch_shapes=[
                pltpu.VMEM((tq, 1), jnp.float32),       # positive logits (per row)
                pltpu.VMEM((2 * tq, 1), jnp.float32),   # exp-sum accumulators (2 views)
            ],
        ),
        compiler_params=pltpu.CompilerParams(
            dimension_semantics=("parallel", "arbitrary"),
            vmem_limit_bytes=vmem_limit),
    )(zq, zkt)

    # per_row[i] = logprob_pos(row i, view1) + logprob_pos(row i, view2); padded
    # rows (>= b) are garbage and excluded before the reduction.
    return -jnp.sum(per_row[:b, 0]) / (2.0 * b)


def _ntxent_ref(z1, z2, temperature=0.5):
    # Pure-JAX f32 reference mirroring the PyTorch module exactly.
    b = z1.shape[0]
    z = jnp.concatenate([z1, z2], axis=0).astype(jnp.float32)
    zn = z / jnp.maximum(jnp.linalg.norm(z, axis=-1, keepdims=True), 1e-12)
    logits = (zn @ zn.T) / temperature
    logits = logits - jnp.max(logits, axis=1, keepdims=True)
    n = 2 * b
    idx = jnp.arange(n)
    diag = idx[:, None] == idx[None, :]
    pos = (idx[None, :] == idx[:, None] + b) | (idx[:, None] == idx[None, :] + b)
    exp_logits = jnp.exp(logits) * jnp.where(diag, 0.0, 1.0)
    log_prob = logits - jnp.log(jnp.sum(exp_logits, axis=1, keepdims=True))
    mean_log_prob_pos = jnp.sum(pos * log_prob, axis=1) / jnp.sum(pos, axis=1)
    return -jnp.mean(mean_log_prob_pos)


if __name__ == "__main__":
    key = jax.random.PRNGKey(0)
    k1, k2, k3, k4 = jax.random.split(key, 4)

    # bf16 matmul path vs f32 reference -> loosened tolerance (~1e-2 scale).
    TOL = dict(rtol=3e-2, atol=3e-2)

    # Small single-tile shape: batch=4, embedding dim=32.
    B, F = 4, 32
    z1 = jax.random.normal(k1, (B, F), dtype=jnp.float32)
    z2 = jax.random.normal(k2, (B, F), dtype=jnp.float32)
    loss = jax.block_until_ready(ntxent_loss(z1, z2, temperature=0.5))
    ref = jax.block_until_ready(_ntxent_ref(z1, z2, temperature=0.5))
    assert jnp.allclose(loss, ref, **TOL), (loss, ref)

    # Multi-tile shape exercising the (query-tile, key-tile) grid and the
    # diagonal-overlap / parallel-query paths: 3 x 3 tiles.
    B2, F2 = 384, 64
    w1 = jax.random.normal(k3, (B2, F2), dtype=jnp.float32)
    w2 = jax.random.normal(k4, (B2, F2), dtype=jnp.float32)
    loss2 = jax.block_until_ready(ntxent_loss(w1, w2, temperature=0.5))
    ref2 = jax.block_until_ready(_ntxent_ref(w1, w2, temperature=0.5))
    assert jnp.allclose(loss2, ref2, **TOL), (loss2, ref2)

    # Ragged batch (not a tile multiple) exercising the zero-padding masks.
    B3, F3 = 100, 48
    v1 = jax.random.normal(k1, (B3, F3), dtype=jnp.float32)
    v2 = jax.random.normal(k2, (B3, F3), dtype=jnp.float32)
    loss3 = jax.block_until_ready(ntxent_loss(v1, v2, temperature=0.5))
    ref3 = jax.block_until_ready(_ntxent_ref(v1, v2, temperature=0.5))
    assert jnp.allclose(loss3, ref3, **TOL), (loss3, ref3)

    print("KERNEL_OK")
</pallas_src>

<mosaic_0001>
module attributes {stable_mosaic.version = 11 : i64} {
  func.func @_ntxent_kernel(%arg0: i32, %arg1: i32, %arg2: memref<16x32xbf16, #tpu.memory_space<vmem>>, %arg3: memref<32x128xbf16, #tpu.memory_space<vmem>>, %arg4: memref<8x1xf32, #tpu.memory_space<vmem>>, %arg5: memref<8x1xf32, #tpu.memory_space<vmem>>, %arg6: memref<16x1xf32, #tpu.memory_space<vmem>>) attributes {dimension_semantics = [#tpu.dimension_semantics<parallel>, #tpu.dimension_semantics<arbitrary>], iteration_bounds = array<i64: 1, 1>, scalar_prefetch = 0 : i64, scratch_operands = 2 : i64, tpu.core_type = #tpu.core_type<tc>, window_params = [{transform_indices = @transform_0, window_bounds = array<i64: 16, 32>}, {transform_indices = @transform_1, window_bounds = array<i64: 32, 128>}, {transform_indices = @transform_2, window_bounds = array<i64: 8, 1>}]} {
    %c0_i32 = arith.constant 0 : i32
    %0 = arith.cmpi eq, %arg1, %c0_i32 : i32
    %1 = arith.extui %0 : i1 to i32
    %c0_i32_0 = arith.constant 0 : i32
    %2 = arith.cmpi ne, %1, %c0_i32_0 : i32
    scf.if %2 {
      %c0_20 = arith.constant 0 : index
      %c0_21 = arith.constant 0 : index
      %37 = vector.load %arg2[%c0_20, %c0_21] : memref<16x32xbf16, #tpu.memory_space<vmem>>, vector<16x32xbf16>
      %38 = arith.extf %37 : vector<16x32xbf16> to vector<16x32xf32>
      %39 = vector.extract_strided_slice %38 {offsets = [0, 0], sizes = [8, 32], strides = [1, 1]} : vector<16x32xf32> to vector<8x32xf32>
      %40 = vector.extract_strided_slice %38 {offsets = [8, 0], sizes = [8, 32], strides = [1, 1]} : vector<16x32xf32> to vector<8x32xf32>
      %41 = arith.mulf %39, %40 : vector<8x32xf32>
      %cst_22 = arith.constant dense<0.000000e+00> : vector<8xf32>
      %42 = vector.multi_reduction <add>, %41, %cst_22 [1] : vector<8x32xf32> to vector<8xf32>
      %43 = vector.shape_cast %42 : vector<8xf32> to vector<8x1xf32>
      %c0_23 = arith.constant 0 : index
      %c0_24 = arith.constant 0 : index
      %44 = vector.load %arg5[%c0_23, %c0_24] : memref<8x1xf32, #tpu.memory_space<vmem>>, vector<8x1xf32>
      tpu.vector_store %arg5[%c0_23, %c0_24], %43 {strides = array<i32>} : memref<8x1xf32, #tpu.memory_space<vmem>>, vector<8x1xf32>,
      %cst_25 = arith.constant 0.000000e+00 : f32
      %45 = vector.broadcast %cst_25 : f32 to vector<16x1xf32>
      %c0_26 = arith.constant 0 : index
      %c0_27 = arith.constant 0 : index
      %46 = vector.load %arg6[%c0_26, %c0_27] : memref<16x1xf32, #tpu.memory_space<vmem>>, vector<16x1xf32>
      tpu.vector_store %arg6[%c0_26, %c0_27], %45 {strides = array<i32>} : memref<16x1xf32, #tpu.memory_space<vmem>>, vector<16x1xf32>,
    } else {
    }
    %c0 = arith.constant 0 : index
    %c0_1 = arith.constant 0 : index
    %3 = vector.load %arg2[%c0, %c0_1] : memref<16x32xbf16, #tpu.memory_space<vmem>>, vector<16x32xbf16>
    %c0_2 = arith.constant 0 : index
    %c0_3 = arith.constant 0 : index
    %4 = vector.load %arg3[%c0_2, %c0_3] : memref<32x128xbf16, #tpu.memory_space<vmem>>, vector<32x128xbf16>
    %cst = arith.constant dense<0.000000e+00> : vector<16x128xf32>
    %5 = tpu.matmul %3, %4, %cst {dimension_numbers = #tpu.dot_dimension_numbers<[1], [0], [0], [1], [0, 0, 1, 1], [], []>} : vector<16x32xbf16>, vector<32x128xbf16>, vector<16x128xf32> -> vector<16x128xf32>
    %cst_4 = arith.constant 2.000000e+00 : f32
    %6 = vector.broadcast %cst_4 : f32 to vector<16x128xf32>
    %7 = arith.subf %5, %6 : vector<16x128xf32>
    %8 = math.exp %7 : vector<16x128xf32>
    %c0_5 = arith.constant 0 : index
    %c0_6 = arith.constant 0 : index
    %9 = vector.load %arg6[%c0_5, %c0_6] : memref<16x1xf32, #tpu.memory_space<vmem>>, vector<16x1xf32>
    %cst_7 = arith.constant dense<0.000000e+00> : vector<16xf32>
    %10 = vector.multi_reduction <add>, %8, %cst_7 [1] : vector<16x128xf32> to vector<16xf32>
    %11 = vector.shape_cast %10 : vector<16xf32> to vector<16x1xf32>
    %12 = arith.addf %9, %11 : vector<16x1xf32>
    %c0_8 = arith.constant 0 : index
    %c0_9 = arith.constant 0 : index
    %13 = vector.load %arg6[%c0_8, %c0_9] : memref<16x1xf32, #tpu.memory_space<vmem>>, vector<16x1xf32>
    tpu.vector_store %arg6[%c0_8, %c0_9], %12 {strides = array<i32>} : memref<16x1xf32, #tpu.memory_space<vmem>>, vector<16x1xf32>,
    %c8_i32 = arith.constant 8 : i32
    %14 = arith.muli %arg0, %c8_i32 : i32
    %c128_i32 = arith.constant 128 : i32
    %15 = arith.muli %arg1, %c128_i32 : i32
    %c128_i32_10 = arith.constant 128 : i32
    %16 = arith.addi %15, %c128_i32_10 : i32
    %17 = arith.cmpi slt, %14, %16 : i32
    %c8_i32_11 = arith.constant 8 : i32
    %18 = arith.addi %14, %c8_i32_11 : i32
    %19 = arith.cmpi slt, %15, %18 : i32
    %20 = arith.andi %17, %19 : i1
    %c4_i32 = arith.constant 4 : i32
    %21 = arith.addi %c4_i32, %14 : i32
    %c128_i32_12 = arith.constant 128 : i32
    %22 = arith.addi %15, %c128_i32_12 : i32
    %23 = arith.cmpi slt, %21, %22 : i32
    %c4_i32_13 = arith.constant 4 : i32
    %24 = arith.addi %c4_i32_13, %14 : i32
    %c8_i32_14 = arith.constant 8 : i32
    %25 = arith.addi %24, %c8_i32_14 : i32
    %26 = arith.cmpi slt, %15, %25 : i32
    %27 = arith.andi %23, %26 : i1
    %28 = arith.ori %20, %27 : i1
    %29 = arith.extui %28 : i1 to i32
    %c0_i32_15 = arith.constant 0 : i32
    %30 = arith.cmpi ne, %29, %c0_i32_15 : i32
    scf.if %30 {
      %37 = tpu.iota {dimensions = array<i32: 0>} : vector<16x128xi32>
      %38 = tpu.iota {dimensions = array<i32: 1>} : vector<16x128xi32>
      %39 = vector.broadcast %14 : i32 to vector<16x128xi32>
      %40 = arith.addi %39, %37 : vector<16x128xi32>
      %c8_i32_20 = arith.constant 8 : i32
      %41 = vector.broadcast %c8_i32_20 : i32 to vector<16x128xi32>
      %42 = arith.cmpi sge, %37, %41 : vector<16x128xi32>
      %c-4_i32 = arith.constant -4 : i32
      %c0_i32_21 = arith.constant 0 : i32
      %43 = vector.broadcast %c-4_i32 : i32 to vector<16x128xi32>
      %44 = vector.broadcast %c0_i32_21 : i32 to vector<16x128xi32>
      %45 = arith.select %42, %43, %44 : vector<16x128xi1>, vector<16x128xi32>
      %46 = arith.addi %40, %45 : vector<16x128xi32>
      %47 = vector.broadcast %15 : i32 to vector<16x128xi32>
      %48 = arith.addi %47, %38 : vector<16x128xi32>
      %49 = arith.cmpi eq, %46, %48 : vector<16x128xi32>
      %cst_22 = arith.constant 0.000000e+00 : f32
      %50 = vector.broadcast %cst_22 : f32 to vector<16x128xf32>
      %51 = arith.select %49, %8, %50 : vector<16x128xi1>, vector<16x128xf32>
      %c0_23 = arith.constant 0 : index
      %c0_24 = arith.constant 0 : index
      %52 = vector.load %arg6[%c0_23, %c0_24] : memref<16x1xf32, #tpu.memory_space<vmem>>, vector<16x1xf32>
      %cst_25 = arith.constant dense<0.000000e+00> : vector<16xf32>
      %53 = vector.multi_reduction <add>, %51, %cst_25 [1] : vector<16x128xf32> to vector<16xf32>
      %54 = vector.shape_cast %53 : vector<16xf32> to vector<16x1xf32>
      %55 = arith.subf %52, %54 : vector<16x1xf32>
      %c0_26 = arith.constant 0 : index
      %c0_27 = arith.constant 0 : index
      %56 = vector.load %arg6[%c0_26, %c0_27] : memref<16x1xf32, #tpu.memory_space<vmem>>, vector<16x1xf32>
      tpu.vector_store %arg6[%c0_26, %c0_27], %55 {strides = array<i32>} : memref<16x1xf32, #tpu.memory_space<vmem>>, vector<16x1xf32>,
    } else {
    }
    %c0_i32_16 = arith.constant 0 : i32
    %31 = arith.cmpi eq, %arg1, %c0_i32_16 : i32
    %32 = arith.extui %31 : i1 to i32
    %c0_i32_17 = arith.constant 0 : i32
    %33 = arith.cmpi ne, %32, %c0_i32_17 : i32
    scf.if %33 {
      %37 = tpu.iota {dimensions = array<i32: 1>} : vector<16x128xi32>
      %38 = vector.broadcast %15 : i32 to vector<16x128xi32>
      %39 = arith.addi %38, %37 : vector<16x128xi32>
      %c8_i32_20 = arith.constant 8 : i32
      %40 = vector.broadcast %c8_i32_20 : i32 to vector<16x128xi32>
      %41 = arith.cmpi sge, %39, %40 : vector<16x128xi32>
      %cst_21 = arith.constant 0.000000e+00 : f32
      %42 = vector.broadcast %cst_21 : f32 to vector<16x128xf32>
      %43 = arith.select %41, %8, %42 : vector<16x128xi1>, vector<16x128xf32>
      %c0_22 = arith.constant 0 : index
      %c0_23 = arith.constant 0 : index
      %44 = vector.load %arg6[%c0_22, %c0_23] : memref<16x1xf32, #tpu.memory_space<vmem>>, vector<16x1xf32>
      %cst_24 = arith.constant dense<0.000000e+00> : vector<16xf32>
      %45 = vector.multi_reduction <add>, %43, %cst_24 [1] : vector<16x128xf32> to vector<16xf32>
      %46 = vector.shape_cast %45 : vector<16xf32> to vector<16x1xf32>
      %47 = arith.subf %44, %46 : vector<16x1xf32>
      %c0_25 = arith.constant 0 : index
      %c0_26 = arith.constant 0 : index
      %48 = vector.load %arg6[%c0_25, %c0_26] : memref<16x1xf32, #tpu.memory_space<vmem>>, vector<16x1xf32>
      tpu.vector_store %arg6[%c0_25, %c0_26], %47 {strides = array<i32>} : memref<16x1xf32, #tpu.memory_space<vmem>>, vector<16x1xf32>,
    } else {
    }
    %c0_i32_18 = arith.constant 0 : i32
    %34 = arith.cmpi eq, %arg1, %c0_i32_18 : i32
    %35 = arith.extui %34 : i1 to i32
    %c0_i32_19 = arith.constant 0 : i32
    %36 = arith.cmpi ne, %35, %c0_i32_19 : i32
    scf.if %36 {
      %c0_20 = arith.constant 0 : index
      %c0_21 = arith.constant 0 : index
      %37 = vector.load %arg6[%c0_20, %c0_21] : memref<16x1xf32, #tpu.memory_space<vmem>>, vector<16x1xf32>
      %c0_22 = arith.constant 0 : index
      %c0_23 = arith.constant 0 : index
      %38 = vector.load %arg5[%c0_22, %c0_23] : memref<8x1xf32, #tpu.memory_space<vmem>>, vector<8x1xf32>
      %cst_24 = arith.constant 2.000000e+00 : f32
      %39 = vector.broadcast %cst_24 : f32 to vector<8x1xf32>
      %40 = arith.mulf %39, %38 : vector<8x1xf32>
      %cst_25 = arith.constant 4.000000e+00 : f32
      %41 = vector.broadcast %cst_25 : f32 to vector<8x1xf32>
      %42 = arith.subf %40, %41 : vector<8x1xf32>
      %43 = vector.extract_strided_slice %37 {offsets = [0, 0], sizes = [8, 1], strides = [1, 1]} : vector<16x1xf32> to vector<8x1xf32>
      %44 = math.log %43 : vector<8x1xf32>
      %45 = arith.subf %42, %44 : vector<8x1xf32>
      %46 = vector.extract_strided_slice %37 {offsets = [8, 0], sizes = [8, 1], strides = [1, 1]} : vector<16x1xf32> to vector<8x1xf32>
      %47 = math.log %46 : vector<8x1xf32>
      %48 = arith.subf %45, %47 : vector<8x1xf32>
      %c0_26 = arith.constant 0 : index
      %c0_27 = arith.constant 0 : index
      %49 = vector.load %arg4[%c0_26, %c0_27] : memref<8x1xf32, #tpu.memory_space<vmem>>, vector<8x1xf32>
      tpu.vector_store %arg4[%c0_26, %c0_27], %48 {strides = array<i32>} : memref<8x1xf32, #tpu.memory_space<vmem>>, vector<8x1xf32>,
    } else {
    }
    return
  }
  func.func @transform_0(%arg0: i32, %arg1: i32) -> (i32, i32) {
    %c0_i32 = arith.constant 0 : i32
    %c0_i32_0 = arith.constant 0 : i32
    return %arg0, %c0_i32 : i32, i32
  }
  func.func @transform_1(%arg0: i32, %arg1: i32) -> (i32, i32) {
    %c0_i32 = arith.constant 0 : i32
    %c0_i32_0 = arith.constant 0 : i32
    return %c0_i32, %arg1 : i32, i32
  }
  func.func @transform_2(%arg0: i32, %arg1: i32) -> (i32, i32) {
    %c0_i32 = arith.constant 0 : i32
    %c0_i32_0 = arith.constant 0 : i32
    return %arg0, %c0_i32 : i32, i32
  }
}

</mosaic_0001>

<llo_original>
// kernel: tpu_custom_call.1
$region0: #{tpu_custom_call.1}
  #allocation0 [shape = 'u32[]', space=smem, size = 0x4, offset = 0x4, fixed_abs, tag = 'smem constant byte address 0x4 - core index']
  #allocation1 [shape = 'u32[144,128]{1,0:T(1,128)}', space=vmem, size = 0x12000, scoped, tag = 'internal scratch']
  #allocation2 [shape = 'f32[8,1]{1,0:T(8,128)}', space=vmem, size = 0x1000, scoped, tag = 'scratch operand']
  #allocation3 [shape = 'f32[16,1]{1,0:T(8,128)}', space=vmem, size = 0x2000, scoped, tag = 'scratch operand']
  %s0 = inlined_call_operand.hbm [shape: bf16[16,32], index: 0, kind: input, shape index: {}]
  %s1 = inlined_call_operand.hbm [shape: bf16[32,128], index: 1, kind: input, shape index: {}]
  %s2 = inlined_call_operand.vmem [shape: f32[8,1], index: 2, kind: output, shape index: {}]
  %s3 = sld [smem:[#allocation0]]
  $region38: #{tpu_custom_call.1} parent=0
    _
  %s5 = ssub.s32 1, %s3
  %s6 = scalar_select 0, %s5, %s3
  $region1: #{tpu_custom_call.1} parent=0
    #allocation4 [shape = 'u8[4096]{0}', space=vmem, size = 0x1000, scoped, tag = 'input window, operand 0, single buffered']
    #allocation5 [shape = 's32[1]{0}', space=sflag, size = 0x4, scoped, tag = 'scoped memory for tpu_custom_call.1']
    #allocation6 [shape = 'u8[8192]{0}', space=vmem, size = 0x2000, scoped, tag = 'input window, operand 1, single buffered']
    #allocation7 [shape = 's32[1]{0}', space=sflag, size = 0x4, scoped, tag = 'scoped memory for tpu_custom_call.1']
    %7 = vsyncpa [#allocation5], 0
    %8 = vsyncpa [#allocation7], 0
    // Predicated region
    $region2: #{tpu_custom_call.1} parent=1 // pred_check
      _
    $region3: #{tpu_custom_call.1} parent=1 // pred_check_branch
      %10 = sbr.rel (0) target = $region5
    $region4: #{tpu_custom_call.1} parent=1 // pred_region
      %s12 = ssub.s32 128, 128
      %13 = vsyncadd [#allocation5], %s12
      %s14 = sshll.u32 [#allocation4], 4
      %s15 = int_to_ptr.vmem [resolvable:$true] %s14
      %20 = dma.hbm_to_vmem [thread:$0]  %s0, 128, %s15, [#allocation5], 64, 64, 4
    $region5: #{tpu_custom_call.1} parent=1 // pred_fallthru
      _
    // Predicated region
    $region6: #{tpu_custom_call.1} parent=1 // pred_check
      _
    $region7: #{tpu_custom_call.1} parent=1 // pred_check_branch
      %22 = sbr.rel (0) target = $region9
    $region8: #{tpu_custom_call.1} parent=1 // pred_region
      %s24 = ssub.s32 256, 256
      %25 = vsyncadd [#allocation7], %s24
      %s26 = sshll.u32 [#allocation6], 4
      %s27 = int_to_ptr.vmem [resolvable:$true] %s26
      %32 = dma.hbm_to_vmem [thread:$0]  %s1, 256, %s27, [#allocation7], 64, 64, 4
    $region9: #{tpu_custom_call.1} parent=1 // pred_fallthru
      _
    // Predicated region
    $region10: #{tpu_custom_call.1} parent=1 // pred_check
      _
    $region11: #{tpu_custom_call.1} parent=1 // pred_check_branch
      %34 = sbr.rel (0) target = $region13
    $region12: #{tpu_custom_call.1} parent=1 // pred_region
      %35 = dma.done [#allocation5], 128
    $region13: #{tpu_custom_call.1} parent=1 // pred_fallthru
      _
    // Predicated region
    $region14: #{tpu_custom_call.1} parent=1 // pred_check
      _
    $region15: #{tpu_custom_call.1} parent=1 // pred_check_branch
      %37 = sbr.rel (0) target = $region17
    $region16: #{tpu_custom_call.1} parent=1 // pred_region
      %38 = dma.done [#allocation7], 256
    $region17: #{tpu_custom_call.1} parent=1 // pred_fallthru
      _
    %p40 = scmp.eq.s32.totalorder 0, 0
    // Predicated region
    $region18: #{tpu_custom_call.1} parent=1 // pred_check
      %p41 = pneg %p40
    $region19: #{tpu_custom_call.1} parent=1 // pred_check_branch
      %43 = sbr.rel (%p41) target = $region21
    $region20: #{tpu_custom_call.1} parent=1 // pred_region
      %v44 = vld [vmem:[#allocation4] sm:$0xf]
      %v45 = vld [vmem:[#allocation4 + $0x4] sm:$0xf]
      %v46 = vunpack.c.l.bf16 %v44
      %v47 = vunpack.c.l.bf16 %v45
      %v48 = vmul.f32 %v46, %v47
      %vm49 = vcmask 261120
      %v50 = vsel %vm49, %v48, 0.0
      %51 = vadd.xlane.f32.xlu0 %v50
      %v52 = vpop.xlane.xlu0 %51
      %vm53 = vcmask 7168
      %54 = vst.msk [vmem:[#allocation2] sm:$0xff] %vm53, %v52
      %55 = vst.msk [vmem:[#allocation3] sm:$0xff] %vm53, 0.0
      %56 = vst.msk [vmem:[#allocation3 + $0x8] sm:$0xff] %vm53, 0.0
    $region21: #{tpu_custom_call.1} parent=1 // pred_fallthru
      _
    %v57 = vld [vmem:[#allocation4] sm:$0xf]
    %v58 = vld [vmem:[#allocation4 + $0x4] sm:$0xf]
    %v59 = vld [vmem:[#allocation6] sm:$0xf]
    %v60 = vld [vmem:[#allocation6 + $0x4] sm:$0xf]
    %v61 = vld [vmem:[#allocation6 + $0x8] sm:$0xf]
    %v62 = vld [vmem:[#allocation6 + $0xc] sm:$0xf]
    %v65 = vunpack.c.l.b16 %v57
    %v66 = vunpack.c.l.b16 %v58
    %v67 = vpack.c.b16 %v66, %v65
    %v72 = vunpack.c.l.b16 %v59
    %v73 = vunpack.c.l.b16 %v60
    %v74 = vunpack.c.l.b16 %v61
    %v75 = vunpack.c.l.b16 %v62
    %v76 = vpack.c.b16 %v73, %v72
    %v77 = vpack.c.b16 %v75, %v74
    %vm80 = vcmask 261120
    %v82 = vsel %vm80, %v67, 0
    %84 = vmatprep.subr.bf16.mxu0 0
    %85 = vmatpush1.bf16.msra.mxu0 %v76
    %86 = vmatprep.subr.bf16.mxu0 0
    %87 = vmatpush1.bf16.msra.mxu0 %v77
    %88 = vmatprep.subr.bf16.mxu0 0
    %89 = vmatpush1.bf16.msra.mxu0 0
    %90 = vmatprep.subr.bf16.mxu0 0
    %91 = vmatpush1.bf16.msra.mxu0 0
    %92 = vmatprep.subr.bf16.mxu0 0
    %93 = vmatpush1.bf16.msra.mxu0 0
    %94 = vmatprep.subr.bf16.mxu0 0
    %95 = vmatpush1.bf16.msra.mxu0 0
    %96 = vmatprep.subr.bf16.mxu0 0
    %97 = vmatpush1.bf16.msra.mxu0 0
    %98 = vmatprep.subr.bf16.mxu0 0
    %99 = vmatpush1.bf16.msra.mxu0 0
    %100 = vmatprep.subr.bf16.mxu0 0
    %101 = vmatpush1.bf16.msra.mxu0 0
    %102 = vmatprep.subr.bf16.mxu0 0
    %103 = vmatpush1.bf16.msra.mxu0 0
    %104 = vmatprep.subr.bf16.mxu0 0
    %105 = vmatpush1.bf16.msra.mxu0 0
    %106 = vmatprep.subr.bf16.mxu0 0
    %107 = vmatpush1.bf16.msra.mxu0 0
    %108 = vmatprep.subr.bf16.mxu0 0
    %109 = vmatpush1.bf16.msra.mxu0 0
    %110 = vmatprep.subr.bf16.mxu0 0
    %111 = vmatpush1.bf16.msra.mxu0 0
    %112 = vmatprep.subr.bf16.mxu0 0
    %113 = vmatpush1.bf16.msra.mxu0 0
    %114 = vmatprep.subr.bf16.mxu0 0
    %115 = vmatpush1.bf16.msra.mxu0 0
    %116 = vmatprep.mubr.bf16.mxu0 0
    %117 = vmatmul.mubr.bf16.gmra.mrb[0].mxu0 %v82
    %v118 = vpop.f32.mrb[0].mxu0
    %v119 = vadd.f32 0.0, %v118
    %v120 = vpop.f32.mrb[0].mxu0
    %v121 = vpop.f32.mrb[0].mxu0
    %v122 = vadd.f32 0.0, %v121
    %v123 = vpop.f32.mrb[0].mxu0
    %124 = vdwg.mxu0
    %v125 = vsub.f32 %v119, 2.0
    %v126 = vsub.f32 %v122, 2.0
    %v127 = vmul.f32 %v125, 1.442695
    %v128 = vpow.pop %v127
    %v129 = vmul.f32 %v126, 1.442695
    %v130 = vpow.pop %v129
    %v131 = vld [vmem:[#allocation3] sm:$0xff]
    %v132 = vld [vmem:[#allocation3 + $0x8] sm:$0xff]
    %133 = vadd.xlane.f32.xlu0 %v128
    %v134 = vpop.xlane.xlu0 %133
    %135 = vadd.xlane.f32.xlu0 %v130
    %v136 = vpop.xlane.xlu0 %135
    %v137 = vadd.f32 %v131, %v134
    %v138 = vadd.f32 %v132, %v136
    %vm139 = vcmask 7168
    %140 = vst.msk [vmem:[#allocation3] sm:$0xff] %vm139, %v137
    %141 = vst.msk [vmem:[#allocation3 + $0x8] sm:$0xff] %vm139, %v138
    %s142 = smul.u32 0, 8
    %s143 = smul.u32 0, 128
    %s144 = sadd.s32 %s143, 128
    %p145 = scmp.lt.s32.totalorder %s142, %s144
    %s146 = sadd.s32 %s142, 8
    %p147 = scmp.lt.s32.totalorder %s143, %s146
    %p148 = pnand %p145, %p147
    %p149 = pneg %p148
    %s150 = sadd.s32 %s142, 4
    %p151 = scmp.lt.s32.totalorder %s150, %s144
    %s152 = sadd.s32 %s142, 12
    %p153 = scmp.lt.s32.totalorder %s143, %s152
    %p154 = pnand %p151, %p153
    %p155 = pneg %p154
    %p156 = por %p149, %p155
    // Predicated region
    $region22: #{tpu_custom_call.1} parent=1 // pred_check
      %p157 = pneg %p156
    $region23: #{tpu_custom_call.1} parent=1 // pred_check_branch
      %159 = sbr.rel (%p157) target = $region25
    $region24: #{tpu_custom_call.1} parent=1 // pred_region
      %v160 = vlaneseq
      %v161 = vshrl.u32 %v160, 7
      %v162 = vadd.s32 %v161, 8
      %v163 = vlaneseq
      %v164 = vand.u32 %v163, 127
      %v165 = vstv %s142
      %v166 = vadd.s32 %v165, %v161
      %v167 = vadd.s32 %v165, %v162
      %vm168 = vcmp.ge.s32.totalorder %v161, 8
      %vm169 = vcmp.ge.s32.totalorder %v162, 8
      %v170 = vsel %vm168, 4294967292, 0
      %v171 = vsel %vm169, 4294967292, 0
      %v172 = vadd.s32 %v166, %v170
      %v173 = vadd.s32 %v167, %v171
      %v174 = vstv %s143
      %v175 = vadd.s32 %v174, %v164
      %vm176 = vcmp.eq.s32.totalorder %v172, %v175
      %vm177 = vcmp.eq.s32.totalorder %v173, %v175
      %v178 = vsel %vm176, %v128, 0.0
      %v179 = vsel %vm177, %v130, 0.0
      %v180 = vld [vmem:[#allocation3] sm:$0xff]
      %v181 = vld [vmem:[#allocation3 + $0x8] sm:$0xff]
      %182 = vadd.xlane.f32.xlu0 %v178
      %v183 = vpop.xlane.xlu0 %182
      %184 = vadd.xlane.f32.xlu0 %v179
      %v185 = vpop.xlane.xlu0 %184
      %v186 = vsub.f32 %v180, %v183
      %v187 = vsub.f32 %v181, %v185
      %188 = vst.msk [vmem:[#allocation3] sm:$0xff] %vm139, %v186
      %189 = vst.msk [vmem:[#allocation3 + $0x8] sm:$0xff] %vm139, %v187
    $region25: #{tpu_custom_call.1} parent=1 // pred_fallthru
      _
    // Predicated region
    $region26: #{tpu_custom_call.1} parent=1 // pred_check
      %p190 = pneg %p40
    $region27: #{tpu_custom_call.1} parent=1 // pred_check_branch
      %192 = sbr.rel (%p190) target = $region29
    $region28: #{tpu_custom_call.1} parent=1 // pred_region
      %v193 = vlaneseq
      %v194 = vand.u32 %v193, 127
      %v195 = vstv %s143
      %v196 = vadd.s32 %v195, %v194
      %vm197 = vcmp.ge.s32.totalorder %v196, 8
      %v198 = vsel %vm197, %v128, 0.0
      %v199 = vsel %vm197, %v130, 0.0
      %v200 = vld [vmem:[#allocation3] sm:$0xff]
      %v201 = vld [vmem:[#allocation3 + $0x8] sm:$0xff]
      %202 = vadd.xlane.f32.xlu0 %v198
      %v203 = vpop.xlane.xlu0 %202
      %204 = vadd.xlane.f32.xlu0 %v199
      %v205 = vpop.xlane.xlu0 %204
      %v206 = vsub.f32 %v200, %v203
      %v207 = vsub.f32 %v201, %v205
      %208 = vst.msk [vmem:[#allocation3] sm:$0xff] %vm139, %v206
      %209 = vst.msk [vmem:[#allocation3 + $0x8] sm:$0xff] %vm139, %v207
      %v210 = vld [vmem:[#allocation3] sm:$0xff]
      %v211 = vld [vmem:[#allocation3 + $0x8] sm:$0xff]
      %v212 = vld [vmem:[#allocation2] sm:$0xff]
      %v213 = vmul.f32 %v212, 2.0
      %v214 = vsub.f32 %v213, 4.0
      %v215 = vlog2.pop %v210
      %v216 = vmul.f32 %v215, 0.6931472
      %v217 = vsub.f32 %v214, %v216
      %v218 = vlog2.pop %v211
      %v219 = vmul.f32 %v218, 0.6931472
      %v220 = vsub.f32 %v217, %v219
      %221 = vst.msk [vmem:[%s2] sm:$0xff] %vm139, %v220
    $region29: #{tpu_custom_call.1} parent=1 // pred_fallthru
      _
    // Predicated region
    $region30: #{tpu_custom_call.1} parent=1 // pred_check
      _
    $region31: #{tpu_custom_call.1} parent=1 // pred_check_branch
      %223 = sbr.rel (0) target = $region33
    $region32: #{tpu_custom_call.1} parent=1 // pred_region
      _
    $region33: #{tpu_custom_call.1} parent=1 // pred_fallthru
      _
    // Predicated region
    $region34: #{tpu_custom_call.1} parent=1 // pred_check
      _
    $region35: #{tpu_custom_call.1} parent=1 // pred_check_branch
      %225 = sbr.rel (0) target = $region37
    $region36: #{tpu_custom_call.1} parent=1 // pred_region
      _
    $region37: #{tpu_custom_call.1} parent=1 // pred_fallthru
      _
    %226 = vsyncpa [#allocation5], 1
    %227 = vsyncpa [#allocation7], 1

</llo_original>
